<compile_context>
chip_gen: v5e
topology: v5e:2x2
jax: 0.10.0
libtpu: 0.0.40
codegen_flags: <defaults>
</compile_context>

<pallas_src>
import jax
import jax.numpy as jnp
from jax.experimental import pallas as pl
from jax.experimental.pallas import tpu as pltpu


# Tile ceilings, chosen so double-buffered tiles fit every TPU generation
# (v5e/v6e 128 MiB VMEM, v7x 64 MiB/TC). Worst-case per-step footprint:
#   x  (1024x2048 bf16) = 4 MiB * 2 buffers
#   wT (2048x1024 bf16) = 4 MiB * 2 buffers
#   o  (1024x1024 f32 ) = 4 MiB * 2 buffers
#   acc(1024x1024 f32 ) = 4 MiB (only when the K grid axis is kept)
# -> <= ~28 MiB, comfortably under the 48 MiB scoped limit below.
_TM_MAX = 1024
_TN_MAX = 1024
_TK_MAX = 2048            # also the threshold for collapsing the K grid axis
_VMEM_LIMIT_BYTES = 48 * 1024 * 1024


def _round_up(x: int, m: int) -> int:
    return ((x + m - 1) // m) * m


def _choose_tile(dim: int, unit: int, max_tile: int):
    """Return (tile, padded_dim): tile is a multiple of `unit` (lane/sublane
    requirement), padded_dim is a multiple of tile. Small dims get a single
    full-extent tile."""
    small = _round_up(dim, unit)
    if small <= max_tile:
        return small, small
    return max_tile, _round_up(dim, max_tile)


def _linear_kernel_noacc(x_ref, wt_ref, b_ref, o_ref):
    """Single-K-block case: one fused MXU matmul + f32 bias + downcast."""
    o_ref[...] = (
        jnp.dot(x_ref[...], wt_ref[...], preferred_element_type=jnp.float32)
        + b_ref[...]
    ).astype(o_ref.dtype)


def _linear_kernel_acc(x_ref, wt_ref, b_ref, o_ref, acc_ref):
    """K split across the last ('arbitrary') grid axis with an f32 VMEM
    accumulator. The final partial product is folded into the epilogue store
    (no extra accumulator write+read on the last step)."""
    k = pl.program_id(2)
    last = pl.num_programs(2) - 1

    @pl.when(k == 0)
    def _():
        acc_ref[...] = jnp.zeros_like(acc_ref)

    partial = jnp.dot(x_ref[...], wt_ref[...],
                      preferred_element_type=jnp.float32)

    @pl.when(k != last)
    def _():
        acc_ref[...] += partial

    @pl.when(k == last)
    def _():
        o_ref[...] = (acc_ref[...] + partial + b_ref[...]).astype(o_ref.dtype)


def prepare_linear_norm(weight, bias=None, compute_dtype=jnp.bfloat16):
    """One-time parameter prep (hoisted out of the forward hot path):
    transpose W, pad K/N to tile multiples, cast matmul operand to bf16,
    keep bias in f32 for the epilogue."""
    out_dim, in_dim = weight.shape
    tk, k_pad = _choose_tile(in_dim, 128, _TK_MAX)
    tn, n_pad = _choose_tile(out_dim, 128, _TN_MAX)

    wt = weight.T
    if wt.shape != (k_pad, n_pad):
        # Zero K-padding adds 0 to the reduction; N-padding cols are sliced off.
        wt = jnp.pad(wt, ((0, k_pad - in_dim), (0, n_pad - out_dim)))
    wt = wt.astype(compute_dtype)

    if bias is None:
        b = jnp.zeros((n_pad,), jnp.float32)
    else:
        b = bias.astype(jnp.float32)
        if n_pad != out_dim:
            b = jnp.pad(b, (0, n_pad - out_dim))
    b = b.reshape(1, n_pad)

    return dict(wt=wt, b=b, in_dim=in_dim, out_dim=out_dim,
                k_pad=k_pad, n_pad=n_pad, tk=tk, tn=tn,
                compute_dtype=compute_dtype)


def linear_norm_forward(x, params):
    """y = x @ W.T + b using pre-prepared params (see prepare_linear_norm)."""
    in_dim, out_dim = params["in_dim"], params["out_dim"]
    k_pad, n_pad = params["k_pad"], params["n_pad"]
    tk, tn = params["tk"], params["tn"]
    wt, b = params["wt"], params["b"]
    compute_dtype = params["compute_dtype"]

    *lead, in_dim_x = x.shape
    assert in_dim_x == in_dim, (in_dim_x, in_dim)
    out_dtype = x.dtype

    m = 1
    for d in lead:
        m *= d
    x2 = x.reshape(m, in_dim)

    tm, m_pad = _choose_tile(m, 8, _TM_MAX)

    # Conditional padding: only materialize a padded copy when needed.
    if x2.shape != (m_pad, k_pad):
        x2 = jnp.pad(x2, ((0, m_pad - m), (0, k_pad - in_dim)))
    x_p = x2.astype(compute_dtype)

    collapsed_k = (tk == k_pad)
    if collapsed_k:
        grid = (m_pad // tm, n_pad // tn)
        out = pl.pallas_call(
            _linear_kernel_noacc,
            out_shape=jax.ShapeDtypeStruct((m_pad, n_pad), out_dtype),
            grid_spec=pltpu.PrefetchScalarGridSpec(
                num_scalar_prefetch=0,
                grid=grid,
                in_specs=[
                    pl.BlockSpec((tm, tk), lambda i, j: (i, 0)),
                    pl.BlockSpec((tk, tn), lambda i, j: (0, j)),
                    pl.BlockSpec((1, tn), lambda i, j: (0, j)),
                ],
                out_specs=pl.BlockSpec((tm, tn), lambda i, j: (i, j)),
            ),
            compiler_params=pltpu.CompilerParams(
                dimension_semantics=("parallel", "parallel"),
                vmem_limit_bytes=_VMEM_LIMIT_BYTES,
            ),
        )(x_p, wt, b)
    else:
        grid = (m_pad // tm, n_pad // tn, k_pad // tk)
        out = pl.pallas_call(
            _linear_kernel_acc,
            out_shape=jax.ShapeDtypeStruct((m_pad, n_pad), out_dtype),
            grid_spec=pltpu.PrefetchScalarGridSpec(
                num_scalar_prefetch=0,
                grid=grid,
                in_specs=[
                    pl.BlockSpec((tm, tk), lambda i, j, k: (i, k)),
                    pl.BlockSpec((tk, tn), lambda i, j, k: (k, j)),
                    pl.BlockSpec((1, tn), lambda i, j, k: (0, j)),
                ],
                out_specs=pl.BlockSpec((tm, tn), lambda i, j, k: (i, j)),
                scratch_shapes=[pltpu.VMEM((tm, tn), jnp.float32)],
            ),
            compiler_params=pltpu.CompilerParams(
                dimension_semantics=("parallel", "parallel", "arbitrary"),
                vmem_limit_bytes=_VMEM_LIMIT_BYTES,
            ),
        )(x_p, wt, b)

    if (m_pad, n_pad) != (m, out_dim):
        out = out[:m, :out_dim]
    return out.reshape(*lead, out_dim)


def linear_norm(x, weight, bias=None, compute_dtype=jnp.bfloat16):
    """One-shot convenience wrapper. For repeated calls with the same weights,
    hoist prepare_linear_norm() out of the loop."""
    return linear_norm_forward(x, prepare_linear_norm(weight, bias,
                                                      compute_dtype))


def init_linear_norm_params(key, in_dim, out_dim, w_init_gain='linear'):
    """Match LinearNorm.__init__: xavier_uniform_ weight, default Linear bias."""
    kw, kb = jax.random.split(key)
    gain = 1.0  # torch.nn.init.calculate_gain('linear') == 1.0
    bound_w = gain * jnp.sqrt(6.0 / (in_dim + out_dim))
    weight = jax.random.uniform(kw, (out_dim, in_dim), minval=-bound_w,
                                maxval=bound_w, dtype=jnp.float32)
    bound_b = 1.0 / jnp.sqrt(in_dim)  # PyTorch Linear default bias init
    bias = jax.random.uniform(kb, (out_dim,), minval=-bound_b, maxval=bound_b,
                              dtype=jnp.float32)
    return weight, bias


def _ref_linear(x, weight, bias):
    """Pure-JAX reference with the same bf16-operand / f32-accumulate math."""
    *lead, in_dim = x.shape
    out_dim = weight.shape[0]
    xf = x.reshape(-1, in_dim).astype(jnp.bfloat16).astype(jnp.float32)
    wf = weight.T.astype(jnp.bfloat16).astype(jnp.float32)
    return (jnp.dot(xf, wf) + bias).reshape(*lead, out_dim)


if __name__ == "__main__":
    key = jax.random.PRNGKey(0)
    k_x, k_p, k_x2, k_p2 = jax.random.split(key, 4)

    # Test 1: small shapes (collapsed-K fast path). batch=2, seq=8, 32 -> 16.
    B, S, IN, OUT = 2, 8, 32, 16
    x = jax.random.normal(k_x, (B, S, IN), dtype=jnp.float32)
    weight, bias = init_linear_norm_params(k_p, IN, OUT, w_init_gain='linear')

    params = prepare_linear_norm(weight, bias)          # hoisted weight prep
    out = jax.block_until_ready(linear_norm_forward(x, params))
    assert out.shape == (B, S, OUT)
    assert jnp.allclose(out, _ref_linear(x, weight, bias), atol=1e-2, rtol=1e-2)

    # Test 2: in_dim > 2048 exercises the split-K accumulator path.
    IN2, OUT2 = 2560, 16
    x2 = jax.random.normal(k_x2, (B, S, IN2), dtype=jnp.float32)
    weight2, bias2 = init_linear_norm_params(k_p2, IN2, OUT2)
    params2 = prepare_linear_norm(weight2, bias2)
    out2 = jax.block_until_ready(linear_norm_forward(x2, params2))
    assert out2.shape == (B, S, OUT2)
    assert jnp.allclose(out2, _ref_linear(x2, weight2, bias2),
                        atol=5e-2, rtol=1e-2)

    print("KERNEL_OK")
</pallas_src>

<mosaic_0001>
module attributes {stable_mosaic.version = 11 : i64} {
  func.func @_linear_kernel_noacc(%arg0: i32, %arg1: i32, %arg2: memref<16x128xbf16, #tpu.memory_space<vmem>>, %arg3: memref<128x128xbf16, #tpu.memory_space<vmem>>, %arg4: memref<1x128xf32, #tpu.memory_space<vmem>>, %arg5: memref<16x128xf32, #tpu.memory_space<vmem>>) attributes {dimension_semantics = [#tpu.dimension_semantics<parallel>, #tpu.dimension_semantics<parallel>], iteration_bounds = array<i64: 1, 1>, scalar_prefetch = 0 : i64, scratch_operands = 0 : i64, tpu.core_type = #tpu.core_type<tc>, window_params = [{transform_indices = @transform_0, window_bounds = array<i64: 16, 128>}, {transform_indices = @transform_1, window_bounds = array<i64: 128, 128>}, {transform_indices = @transform_2, window_bounds = array<i64: 1, 128>}, {transform_indices = @transform_3, window_bounds = array<i64: 16, 128>}]} {
    %c0 = arith.constant 0 : index
    %c0_0 = arith.constant 0 : index
    %0 = vector.load %arg2[%c0, %c0_0] : memref<16x128xbf16, #tpu.memory_space<vmem>>, vector<16x128xbf16>
    %c0_1 = arith.constant 0 : index
    %c0_2 = arith.constant 0 : index
    %1 = vector.load %arg3[%c0_1, %c0_2] : memref<128x128xbf16, #tpu.memory_space<vmem>>, vector<128x128xbf16>
    %cst = arith.constant dense<0.000000e+00> : vector<16x128xf32>
    %2 = tpu.matmul %0, %1, %cst {dimension_numbers = #tpu.dot_dimension_numbers<[1], [0], [0], [1], [0, 0, 1, 1], [], []>} : vector<16x128xbf16>, vector<128x128xbf16>, vector<16x128xf32> -> vector<16x128xf32>
    %c0_3 = arith.constant 0 : index
    %c0_4 = arith.constant 0 : index
    %3 = vector.load %arg4[%c0_3, %c0_4] : memref<1x128xf32, #tpu.memory_space<vmem>>, vector<1x128xf32>
    %4 = vector.broadcast %3 : vector<1x128xf32> to vector<16x128xf32>
    %5 = arith.addf %2, %4 : vector<16x128xf32>
    %c0_5 = arith.constant 0 : index
    %c0_6 = arith.constant 0 : index
    %6 = vector.load %arg5[%c0_5, %c0_6] : memref<16x128xf32, #tpu.memory_space<vmem>>, vector<16x128xf32>
    tpu.vector_store %arg5[%c0_5, %c0_6], %5 {strides = array<i32>} : memref<16x128xf32, #tpu.memory_space<vmem>>, vector<16x128xf32>,
    return
  }
  func.func @transform_0(%arg0: i32, %arg1: i32) -> (i32, i32) {
    %c0_i32 = arith.constant 0 : i32
    %c0_i32_0 = arith.constant 0 : i32
    return %arg0, %c0_i32 : i32, i32
  }
  func.func @transform_1(%arg0: i32, %arg1: i32) -> (i32, i32) {
    %c0_i32 = arith.constant 0 : i32
    %c0_i32_0 = arith.constant 0 : i32
    return %c0_i32, %arg1 : i32, i32
  }
  func.func @transform_2(%arg0: i32, %arg1: i32) -> (i32, i32) {
    %c0_i32 = arith.constant 0 : i32
    %c0_i32_0 = arith.constant 0 : i32
    return %c0_i32, %arg1 : i32, i32
  }
  func.func @transform_3(%arg0: i32, %arg1: i32) -> (i32, i32) {
    %c0_i32 = arith.constant 0 : i32
    return %arg0, %arg1 : i32, i32
  }
}

</mosaic_0001>

<llo_original>
// kernel: tpu_custom_call.1
$region0: #{tpu_custom_call.1}
  #allocation0 [shape = 'u32[]', space=smem, size = 0x4, offset = 0x4, fixed_abs, tag = 'smem constant byte address 0x4 - core index']
  #allocation1 [shape = 'u32[72,128]{1,0:T(1,128)}', space=vmem, size = 0x9000, scoped, tag = 'internal scratch']
  %s0 = inlined_call_operand.hbm [shape: bf16[16,128], index: 0, kind: input, shape index: {}]
  %s1 = inlined_call_operand.hbm [shape: bf16[128,128], index: 1, kind: input, shape index: {}]
  %s2 = inlined_call_operand.vmem [shape: f32[1,128], index: 2, kind: input, shape index: {}]
  %s3 = inlined_call_operand.hbm [shape: f32[16,128], index: 3, kind: output, shape index: {}]
  %s4 = sld [smem:[#allocation0]]
  $region30: #{tpu_custom_call.1} parent=0
    _
  %s6 = ssub.s32 1, %s4
  %s7 = scalar_select 0, %s6, %s4
  $region1: #{tpu_custom_call.1} parent=0
    #allocation2 [shape = 'u8[4096]{0}', space=vmem, size = 0x1000, scoped, tag = 'input window, operand 0, single buffered']
    #allocation3 [shape = 's32[1]{0}', space=sflag, size = 0x4, scoped, tag = 'scoped memory for tpu_custom_call.1']
    #allocation4 [shape = 's32[1]{0}', space=sflag, size = 0x4, scoped, tag = 'scoped memory for tpu_custom_call.1']
    #allocation5 [shape = 'u8[32768]{0}', space=vmem, size = 0x8000, scoped, tag = 'input window, operand 1, single buffered']
    #allocation6 [shape = 's32[1]{0}', space=sflag, size = 0x4, scoped, tag = 'scoped memory for tpu_custom_call.1']
    #allocation7 [shape = 'u8[8192]{0}', space=vmem, size = 0x2000, scoped, tag = 'output window, operand 0, single buffered']
    %8 = vsyncpa [#allocation3], 0
    %9 = vsyncpa [#allocation6], 0
    %10 = vsyncpa [#allocation4], 0
    // Predicated region
    $region2: #{tpu_custom_call.1} parent=1 // pred_check
      _
    $region3: #{tpu_custom_call.1} parent=1 // pred_check_branch
      %12 = sbr.rel (0) target = $region5
    $region4: #{tpu_custom_call.1} parent=1 // pred_region
      %14 = vsyncadd [#allocation3], 0
      %s15 = sshll.u32 %s0, 4
      %s16 = int_to_ptr.hbm [resolvable:$true] %s15
      %s17 = sshll.u32 [#allocation2], 4
      %s18 = int_to_ptr.vmem [resolvable:$true] %s17
      %23 = dma.hbm_to_vmem [thread:$0]  %s16, 128, %s18, [#allocation3], 64, 64, 4
    $region5: #{tpu_custom_call.1} parent=1 // pred_fallthru
      _
    // Predicated region
    $region6: #{tpu_custom_call.1} parent=1 // pred_check
      _
    $region7: #{tpu_custom_call.1} parent=1 // pred_check_branch
      %25 = sbr.rel (0) target = $region9
    $region8: #{tpu_custom_call.1} parent=1 // pred_region
      %27 = vsyncadd [#allocation6], 0
      %s28 = sshll.u32 %s1, 4
      %s29 = int_to_ptr.hbm [resolvable:$true] %s28
      %s30 = sshll.u32 [#allocation5], 4
      %s31 = int_to_ptr.vmem [resolvable:$true] %s30
      %36 = dma.hbm_to_vmem [thread:$0]  %s29, 1024, %s31, [#allocation6], 64, 64, 4
    $region9: #{tpu_custom_call.1} parent=1 // pred_fallthru
      _
    // Predicated region
    $region10: #{tpu_custom_call.1} parent=1 // pred_check
      _
    $region11: #{tpu_custom_call.1} parent=1 // pred_check_branch
      %38 = sbr.rel (0) target = $region13
    $region12: #{tpu_custom_call.1} parent=1 // pred_region
      _
    $region13: #{tpu_custom_call.1} parent=1 // pred_fallthru
      _
    // Predicated region
    $region14: #{tpu_custom_call.1} parent=1 // pred_check
      _
    $region15: #{tpu_custom_call.1} parent=1 // pred_check_branch
      %40 = sbr.rel (0) target = $region17
    $region16: #{tpu_custom_call.1} parent=1 // pred_region
      %42 = dma.done [#allocation3], 128
    $region17: #{tpu_custom_call.1} parent=1 // pred_fallthru
      _
    // Predicated region
    $region18: #{tpu_custom_call.1} parent=1 // pred_check
      _
    $region19: #{tpu_custom_call.1} parent=1 // pred_check_branch
      %44 = sbr.rel (0) target = $region21
    $region20: #{tpu_custom_call.1} parent=1 // pred_region
      %46 = dma.done [#allocation6], 1024
    $region21: #{tpu_custom_call.1} parent=1 // pred_fallthru
      _
    %v47 = vld [vmem:[#allocation2] sm:$0xf]
    %v48 = vld [vmem:[#allocation2 + $0x4] sm:$0xf]
    %v49 = vld [vmem:[#allocation5] sm:$0xf]
    %v50 = vld [vmem:[#allocation5 + $0x4] sm:$0xf]
    %v51 = vld [vmem:[#allocation5 + $0x8] sm:$0xf]
    %v52 = vld [vmem:[#allocation5 + $0xc] sm:$0xf]
    %v53 = vld [vmem:[#allocation5 + $0x10] sm:$0xf]
    %v54 = vld [vmem:[#allocation5 + $0x14] sm:$0xf]
    %v55 = vld [vmem:[#allocation5 + $0x18] sm:$0xf]
    %v56 = vld [vmem:[#allocation5 + $0x1c] sm:$0xf]
    %v57 = vld [vmem:[#allocation5 + $0x20] sm:$0xf]
    %v58 = vld [vmem:[#allocation5 + $0x24] sm:$0xf]
    %v59 = vld [vmem:[#allocation5 + $0x28] sm:$0xf]
    %v60 = vld [vmem:[#allocation5 + $0x2c] sm:$0xf]
    %v61 = vld [vmem:[#allocation5 + $0x30] sm:$0xf]
    %v62 = vld [vmem:[#allocation5 + $0x34] sm:$0xf]
    %v63 = vld [vmem:[#allocation5 + $0x38] sm:$0xf]
    %v64 = vld [vmem:[#allocation5 + $0x3c] sm:$0xf]
    %v65 = vld [vmem:[%s2] sm:$0x1]
    %v67 = vperm.slane %v65, 0
    %v71 = vunpack.c.l.b16 %v47
    %v72 = vunpack.c.l.b16 %v48
    %v73 = vpack.c.b16 %v72, %v71
    %v91 = vunpack.c.l.b16 %v49
    %v92 = vunpack.c.l.b16 %v50
    %v93 = vunpack.c.l.b16 %v51
    %v94 = vunpack.c.l.b16 %v52
    %v95 = vunpack.c.l.b16 %v53
    %v96 = vunpack.c.l.b16 %v54
    %v97 = vunpack.c.l.b16 %v55
    %v98 = vunpack.c.l.b16 %v56
    %v99 = vunpack.c.l.b16 %v57
    %v100 = vunpack.c.l.b16 %v58
    %v101 = vunpack.c.l.b16 %v59
    %v102 = vunpack.c.l.b16 %v60
    %v103 = vunpack.c.l.b16 %v61
    %v104 = vunpack.c.l.b16 %v62
    %v105 = vunpack.c.l.b16 %v63
    %v106 = vunpack.c.l.b16 %v64
    %v107 = vpack.c.b16 %v92, %v91
    %v108 = vpack.c.b16 %v94, %v93
    %v109 = vpack.c.b16 %v96, %v95
    %v110 = vpack.c.b16 %v98, %v97
    %v111 = vpack.c.b16 %v100, %v99
    %v112 = vpack.c.b16 %v102, %v101
    %v113 = vpack.c.b16 %v104, %v103
    %v114 = vpack.c.b16 %v106, %v105
    %123 = vmatpush.bf16.msra.mxu0 %v114
    %124 = vmatpush.bf16.msra.mxu0 %v113
    %125 = vmatpush.bf16.msra.mxu0 %v112
    %126 = vmatpush.bf16.msra.mxu0 %v111
    %127 = vmatpush.bf16.msra.mxu0 %v110
    %128 = vmatpush.bf16.msra.mxu0 %v109
    %129 = vmatpush.bf16.msra.mxu0 %v108
    %130 = vmatpush.bf16.msra.mxu0 %v107
    %131 = vmatmul.bf16.gmra.mxu0 %v73
    %v132 = vpop.f32.mrf.mxu0
    %v133 = vadd.f32 %v67, %v132
    %v134 = vpop.f32.mrf.mxu0
    %v135 = vadd.f32 %v67, %v134
    %136 = vdwg.mxu0
    %137 = vst [vmem:[#allocation7] sm:$0xff] %v133
    %138 = vst [vmem:[#allocation7 + $0x8] sm:$0xff] %v135
    // Predicated region
    $region22: #{tpu_custom_call.1} parent=1 // pred_check
      _
    $region23: #{tpu_custom_call.1} parent=1 // pred_check_branch
      %140 = sbr.rel (0) target = $region25
    $region24: #{tpu_custom_call.1} parent=1 // pred_region
      %142 = vsyncadd [#allocation4], 0
      %s143 = sshll.u32 [#allocation7], 4
      %s144 = int_to_ptr.vmem [resolvable:$true] %s143
      %s145 = sshll.u32 %s3, 4
      %s146 = int_to_ptr.hbm [resolvable:$true] %s145
      %151 = dma.vmem_to_hbm [thread:$0]  %s144, 256, %s146, [#allocation4], 128, 128, 8
    $region25: #{tpu_custom_call.1} parent=1 // pred_fallthru
      _
    // Predicated region
    $region26: #{tpu_custom_call.1} parent=1 // pred_check
      _
    $region27: #{tpu_custom_call.1} parent=1 // pred_check_branch
      %153 = sbr.rel (0) target = $region29
    $region28: #{tpu_custom_call.1} parent=1 // pred_region
      %155 = dma.done [#allocation4], 256
    $region29: #{tpu_custom_call.1} parent=1 // pred_fallthru
      _
    %156 = vsyncpa [#allocation3], 1
    %157 = vsyncpa [#allocation6], 1
    %158 = vsyncpa [#allocation4], 1

</llo_original>
